<compile_context>
chip_gen: v5e
topology: v5e:2x2
jax: 0.10.0
libtpu: 0.0.40
codegen_flags: <defaults>
</compile_context>

<pallas_src>
import functools

import jax
import jax.numpy as jnp
from jax.experimental import pallas as pl
from jax.experimental.pallas import tpu as pltpu

_LANE = 128      # lane width (last-dim tiling quantum)
_SUBLANE = 8     # sublane quantum (second-to-last dim)


def _round_up(n, m):
    return ((n + m - 1) // m) * m


def _mlp_fused_kernel(x_ref, *refs, num_layers):
    """Fused MLP body: h = x; h = h @ W_i + b_i per layer; out = sigmoid(h).

    refs = (w0, b0, w1, b1, ..., w{n-1}, b{n-1}, o_ref).
    Weights are bf16, biases f32, accumulation f32; everything VMEM-resident.
    """
    o_ref = refs[-1]
    h = x_ref[...]                                   # (TB, F0_pad) bf16
    for i in range(num_layers):
        w = refs[2 * i][...]                         # (Fi_pad, Fi+1_pad) bf16
        b = refs[2 * i + 1][...]                     # (1, Fi+1_pad) f32
        acc = jnp.dot(h, w, preferred_element_type=jnp.float32) + b
        h = acc.astype(jnp.bfloat16) if i + 1 < num_layers else acc
    # exp + approx reciprocal both issue on the EUP slot (idle alongside the
    # MXU), keeping the epilogue off the VPU / store critical path.
    sig = pl.reciprocal(1.0 + jnp.exp(-h), approx=True)
    o_ref[...] = sig.astype(o_ref.dtype)


def init_mlp_params(key, in_features, hidden_dims):
    """Deterministic init mimicking nn.Linear default (uniform +-1/sqrt(fan_in)).

    Returns PyTorch-layout params: list of (W (out, in), b (out,))."""
    dims = [in_features] + list(hidden_dims)
    params = []
    for i in range(len(hidden_dims)):
        fan_in, fan_out = dims[i], dims[i + 1]
        key, kw, kb = jax.random.split(key, 3)
        bound = 1.0 / jnp.sqrt(jnp.float32(fan_in))
        w = jax.random.uniform(kw, (fan_out, fan_in), jnp.float32, -bound, bound)
        b = jax.random.uniform(kb, (fan_out,), jnp.float32, -bound, bound)
        params.append((w, b))
    return params


def prepare_params(params):
    """One-time prep: transpose to (F_in, F_out), zero-pad feature dims to
    multiples of 128, and store weights in bf16 (biases stay f32 for the f32
    epilogue).  Zero padding keeps the linear chain exact: padded activation
    columns stay identically 0 through every layer."""
    prepared = []
    for w, b in params:
        f_out, f_in = w.shape
        f_in_p = _round_up(f_in, _LANE)
        f_out_p = _round_up(f_out, _LANE)
        w_t = (jnp.zeros((f_in_p, f_out_p), jnp.float32)
               .at[:f_in, :f_out].set(w.T)
               .astype(jnp.bfloat16))
        b_p = jnp.zeros((1, f_out_p), jnp.float32).at[0, :f_out].set(b)
        prepared.append((w_t, b_p))
    return prepared


def _choose_batch_tile(B):
    """Batch tile: sublane/lane aligned, padding-aware, MXU-friendly (multiple
    of 128 once B > 128), capped at 1024, and preferring >= 2 grid steps for
    larger batches so v7x's two TensorCores can split the work."""
    b_sub = _round_up(B, _SUBLANE)
    if b_sub <= 128:
        return b_sub                       # single tiny tile
    best = None
    for tb in (1024, 512, 256, 128):
        b_pad = _round_up(B, tb)
        steps = b_pad // tb
        # minimize padded rows; among ties prefer enough steps for 2 TCs,
        # then the largest tile (fewer per-step overheads, bigger DMAs).
        key = (b_pad - B, 0 if steps >= 2 else 1, -tb)
        if best is None or key < best[0]:
            best = (key, tb)
    return best[1]


@functools.partial(jax.jit, static_argnames=("out_features",))
def mlp_forward_pallas(x, prepared_params, out_features):
    """forward(x) = sigmoid(Linear_n(... Linear_1(x))) as one fused Pallas kernel."""
    B, F_in = x.shape
    f_in_p = prepared_params[0][0].shape[0]
    f_out_p = prepared_params[-1][0].shape[1]
    num_layers = len(prepared_params)

    TB = _choose_batch_tile(B)
    B_pad = _round_up(B, TB)
    grid = (B_pad // TB,)

    # Pad the activation input (batch to TB multiple, features to 128 lanes)
    # and cast to bf16: halves input HBM traffic and feeds the MXU directly.
    x_p = (jnp.zeros((B_pad, f_in_p), jnp.float32)
           .at[:B, :F_in].set(x)
           .astype(jnp.bfloat16))

    flat_wb = []
    for w_t, b_p in prepared_params:
        flat_wb += [w_t, b_p]

    # x / out tiles walk the batch grid; weights & biases use constant
    # index_maps and single-buffering (Buffered(1)) so only one VMEM copy of
    # each stays resident across all grid steps.
    in_specs = [pl.BlockSpec((TB, f_in_p), lambda i: (i, 0))]
    for w_t, b_p in prepared_params:
        in_specs.append(pl.BlockSpec(w_t.shape, lambda i: (0, 0),
                                     pipeline_mode=pl.Buffered(1)))
        in_specs.append(pl.BlockSpec(b_p.shape, lambda i: (0, 0),
                                     pipeline_mode=pl.Buffered(1)))
    out_spec = pl.BlockSpec((TB, f_out_p), lambda i: (i, 0))

    # Per-generation VMEM budget (v5e/v6e: 128 MiB, v7x: 64 MiB):
    #   1x resident weights/biases (Buffered(1)) + 2x (double-buffered) input
    #   and output tiles + widest intermediate activation (f32 acc + bf16
    #   copy), with ~25% headroom, capped at 80% of physical VMEM.
    try:
        vmem_cap = int(pltpu.get_tpu_info().vmem_capacity_bytes)
    except Exception:
        vmem_cap = 64 << 20
    bytes_resident = sum(int(a.size) * a.dtype.itemsize for a in flat_wb)
    max_feat = max([f_in_p] + [w.shape[1] for w, _ in prepared_params])
    bytes_x_tiles = 2 * TB * f_in_p * 2
    bytes_o_tiles = 2 * TB * f_out_p * 4
    bytes_interm = TB * max_feat * (4 + 2)
    need = bytes_resident + bytes_x_tiles + bytes_o_tiles + bytes_interm
    vmem_bytes = int(min(max(need * 5 // 4 + (2 << 20), 8 << 20),
                         int(vmem_cap * 0.8)))

    # Advisory cost estimate for XLA's scheduler.
    flops = 2 * B_pad * sum(int(w.shape[0]) * int(w.shape[1])
                            for w, _ in prepared_params)
    bytes_accessed = (int(x_p.size) * 2 + bytes_resident + B_pad * f_out_p * 4)
    cost = pl.CostEstimate(flops=flops,
                           transcendentals=B_pad * f_out_p,
                           bytes_accessed=bytes_accessed)

    kernel = functools.partial(_mlp_fused_kernel, num_layers=num_layers)

    out_p = pl.pallas_call(
        kernel,
        out_shape=jax.ShapeDtypeStruct((B_pad, f_out_p), jnp.float32),
        grid=grid,
        in_specs=in_specs,
        out_specs=out_spec,
        compiler_params=pltpu.CompilerParams(
            dimension_semantics=("parallel",),
            vmem_limit_bytes=vmem_bytes,
        ),
        cost_estimate=cost,
    )(x_p, *flat_wb)

    # Slice off batch padding and lane padding (padded output columns hold
    # sigmoid(0) = 0.5 by construction; they never reach the caller).
    return out_p[:B, :out_features]


def mlp_forward_ref(x, params):
    """Pure-JAX f32 reference (PyTorch-layout params) for correctness checking."""
    for w, b in params:
        x = x @ w.T + b
    return jax.nn.sigmoid(x)


if __name__ == "__main__":
    key = jax.random.PRNGKey(0)
    batch = 8
    in_features = 32
    hidden_dims = [64, 48, 16]

    k_params, k_x = jax.random.split(key)
    params = init_mlp_params(k_params, in_features, hidden_dims)
    x = jax.random.normal(k_x, (batch, in_features), jnp.float32)

    prepared = prepare_params(params)          # transpose + pad + bf16 ONCE
    out = mlp_forward_pallas(x, prepared, hidden_dims[-1])
    out = jax.block_until_ready(out)

    ref = mlp_forward_ref(x, params)
    assert out.shape == (batch, hidden_dims[-1])
    # bf16 matmul inputs + approx reciprocal => looser tolerance than f32.
    assert jnp.allclose(out, ref, atol=2e-2, rtol=2e-2), "mismatch vs reference"

    print("KERNEL_OK")
</pallas_src>

<mosaic_0001>
module attributes {stable_mosaic.version = 11 : i64} {
  func.func @_mlp_fused_kernel(%arg0: i32, %arg1: memref<8x128xbf16, #tpu.memory_space<vmem>>, %arg2: memref<128x128xbf16, #tpu.memory_space<vmem>>, %arg3: memref<1x128xf32, #tpu.memory_space<vmem>>, %arg4: memref<128x128xbf16, #tpu.memory_space<vmem>>, %arg5: memref<1x128xf32, #tpu.memory_space<vmem>>, %arg6: memref<128x128xbf16, #tpu.memory_space<vmem>>, %arg7: memref<1x128xf32, #tpu.memory_space<vmem>>, %arg8: memref<8x128xf32, #tpu.memory_space<vmem>>) attributes {dimension_semantics = [#tpu.dimension_semantics<parallel>], iteration_bounds = array<i64: 1>, scalar_prefetch = 0 : i64, scratch_operands = 0 : i64, tpu.core_type = #tpu.core_type<tc>, window_params = [{transform_indices = @transform_0, window_bounds = array<i64: 8, 128>}, {pipeline_mode = #tpu.pipeline_mode<synchronous>, transform_indices = @transform_1, window_bounds = array<i64: 128, 128>}, {pipeline_mode = #tpu.pipeline_mode<synchronous>, transform_indices = @transform_2, window_bounds = array<i64: 1, 128>}, {pipeline_mode = #tpu.pipeline_mode<synchronous>, transform_indices = @transform_3, window_bounds = array<i64: 128, 128>}, {pipeline_mode = #tpu.pipeline_mode<synchronous>, transform_indices = @transform_4, window_bounds = array<i64: 1, 128>}, {pipeline_mode = #tpu.pipeline_mode<synchronous>, transform_indices = @transform_5, window_bounds = array<i64: 128, 128>}, {pipeline_mode = #tpu.pipeline_mode<synchronous>, transform_indices = @transform_6, window_bounds = array<i64: 1, 128>}, {transform_indices = @transform_7, window_bounds = array<i64: 8, 128>}]} {
    %c0 = arith.constant 0 : index
    %c0_0 = arith.constant 0 : index
    %0 = vector.load %arg1[%c0, %c0_0] : memref<8x128xbf16, #tpu.memory_space<vmem>>, vector<8x128xbf16>
    %c0_1 = arith.constant 0 : index
    %c0_2 = arith.constant 0 : index
    %1 = vector.load %arg2[%c0_1, %c0_2] : memref<128x128xbf16, #tpu.memory_space<vmem>>, vector<128x128xbf16>
    %c0_3 = arith.constant 0 : index
    %c0_4 = arith.constant 0 : index
    %2 = vector.load %arg3[%c0_3, %c0_4] : memref<1x128xf32, #tpu.memory_space<vmem>>, vector<1x128xf32>
    %cst = arith.constant dense<0.000000e+00> : vector<8x128xf32>
    %3 = tpu.matmul %0, %1, %cst {dimension_numbers = #tpu.dot_dimension_numbers<[1], [0], [0], [1], [0, 0, 1, 1], [], []>} : vector<8x128xbf16>, vector<128x128xbf16>, vector<8x128xf32> -> vector<8x128xf32>
    %4 = vector.broadcast %2 : vector<1x128xf32> to vector<8x128xf32>
    %5 = arith.addf %3, %4 : vector<8x128xf32>
    %6 = arith.truncf %5 : vector<8x128xf32> to vector<8x128xbf16>
    %c0_5 = arith.constant 0 : index
    %c0_6 = arith.constant 0 : index
    %7 = vector.load %arg4[%c0_5, %c0_6] : memref<128x128xbf16, #tpu.memory_space<vmem>>, vector<128x128xbf16>
    %c0_7 = arith.constant 0 : index
    %c0_8 = arith.constant 0 : index
    %8 = vector.load %arg5[%c0_7, %c0_8] : memref<1x128xf32, #tpu.memory_space<vmem>>, vector<1x128xf32>
    %cst_9 = arith.constant dense<0.000000e+00> : vector<8x128xf32>
    %9 = tpu.matmul %6, %7, %cst_9 {dimension_numbers = #tpu.dot_dimension_numbers<[1], [0], [0], [1], [0, 0, 1, 1], [], []>} : vector<8x128xbf16>, vector<128x128xbf16>, vector<8x128xf32> -> vector<8x128xf32>
    %10 = vector.broadcast %8 : vector<1x128xf32> to vector<8x128xf32>
    %11 = arith.addf %9, %10 : vector<8x128xf32>
    %12 = arith.truncf %11 : vector<8x128xf32> to vector<8x128xbf16>
    %c0_10 = arith.constant 0 : index
    %c0_11 = arith.constant 0 : index
    %13 = vector.load %arg6[%c0_10, %c0_11] : memref<128x128xbf16, #tpu.memory_space<vmem>>, vector<128x128xbf16>
    %c0_12 = arith.constant 0 : index
    %c0_13 = arith.constant 0 : index
    %14 = vector.load %arg7[%c0_12, %c0_13] : memref<1x128xf32, #tpu.memory_space<vmem>>, vector<1x128xf32>
    %cst_14 = arith.constant dense<0.000000e+00> : vector<8x128xf32>
    %15 = tpu.matmul %12, %13, %cst_14 {dimension_numbers = #tpu.dot_dimension_numbers<[1], [0], [0], [1], [0, 0, 1, 1], [], []>} : vector<8x128xbf16>, vector<128x128xbf16>, vector<8x128xf32> -> vector<8x128xf32>
    %16 = vector.broadcast %14 : vector<1x128xf32> to vector<8x128xf32>
    %17 = arith.addf %15, %16 : vector<8x128xf32>
    %cst_15 = arith.constant 0.000000e+00 : f32
    %18 = vector.broadcast %cst_15 : f32 to vector<8x128xf32>
    %19 = arith.subf %18, %17 : vector<8x128xf32>
    %20 = math.exp %19 : vector<8x128xf32>
    %cst_16 = arith.constant 1.000000e+00 : f32
    %21 = vector.broadcast %cst_16 : f32 to vector<8x128xf32>
    %22 = arith.addf %21, %20 : vector<8x128xf32>
    %23 = tpu.reciprocal %22 {approx = true} : vector<8x128xf32> -> vector<8x128xf32>
    %c0_17 = arith.constant 0 : index
    %c0_18 = arith.constant 0 : index
    %24 = vector.load %arg8[%c0_17, %c0_18] : memref<8x128xf32, #tpu.memory_space<vmem>>, vector<8x128xf32>
    tpu.vector_store %arg8[%c0_17, %c0_18], %23 {strides = array<i32>} : memref<8x128xf32, #tpu.memory_space<vmem>>, vector<8x128xf32>,
    return
  }
  func.func @transform_0(%arg0: i32) -> (i32, i32) {
    %c0_i32 = arith.constant 0 : i32
    %c0_i32_0 = arith.constant 0 : i32
    return %arg0, %c0_i32 : i32, i32
  }
  func.func @transform_1(%arg0: i32) -> (i32, i32) {
    %c0_i32 = arith.constant 0 : i32
    %c0_i32_0 = arith.constant 0 : i32
    %c0_i32_1 = arith.constant 0 : i32
    return %c0_i32, %c0_i32_0 : i32, i32
  }
  func.func @transform_2(%arg0: i32) -> (i32, i32) {
    %c0_i32 = arith.constant 0 : i32
    %c0_i32_0 = arith.constant 0 : i32
    %c0_i32_1 = arith.constant 0 : i32
    return %c0_i32, %c0_i32_0 : i32, i32
  }
  func.func @transform_3(%arg0: i32) -> (i32, i32) {
    %c0_i32 = arith.constant 0 : i32
    %c0_i32_0 = arith.constant 0 : i32
    %c0_i32_1 = arith.constant 0 : i32
    return %c0_i32, %c0_i32_0 : i32, i32
  }
  func.func @transform_4(%arg0: i32) -> (i32, i32) {
    %c0_i32 = arith.constant 0 : i32
    %c0_i32_0 = arith.constant 0 : i32
    %c0_i32_1 = arith.constant 0 : i32
    return %c0_i32, %c0_i32_0 : i32, i32
  }
  func.func @transform_5(%arg0: i32) -> (i32, i32) {
    %c0_i32 = arith.constant 0 : i32
    %c0_i32_0 = arith.constant 0 : i32
    %c0_i32_1 = arith.constant 0 : i32
    return %c0_i32, %c0_i32_0 : i32, i32
  }
  func.func @transform_6(%arg0: i32) -> (i32, i32) {
    %c0_i32 = arith.constant 0 : i32
    %c0_i32_0 = arith.constant 0 : i32
    %c0_i32_1 = arith.constant 0 : i32
    return %c0_i32, %c0_i32_0 : i32, i32
  }
  func.func @transform_7(%arg0: i32) -> (i32, i32) {
    %c0_i32 = arith.constant 0 : i32
    %c0_i32_0 = arith.constant 0 : i32
    return %arg0, %c0_i32 : i32, i32
  }
}

</mosaic_0001>

<llo_original>
// kernel: mlp_forward_pallas.1
$region0: #{mlp_forward_pallas.1}
  #allocation0 [shape = 'u32[]', space=smem, size = 0x4, offset = 0x4, fixed_abs, tag = 'smem constant byte address 0x4 - core index']
  #allocation1 [shape = 'u32[72,128]{1,0:T(1,128)}', space=vmem, size = 0x9000, scoped, tag = 'internal scratch']
  %s0 = inlined_call_operand.vmem [shape: bf16[8,128], index: 0, kind: input, shape index: {}]
  %s1 = inlined_call_operand.hbm [shape: bf16[128,128], index: 1, kind: input, shape index: {}]
  %s2 = inlined_call_operand.vmem [shape: f32[1,128], index: 2, kind: input, shape index: {}]
  %s3 = inlined_call_operand.hbm [shape: bf16[128,128], index: 3, kind: input, shape index: {}]
  %s4 = inlined_call_operand.vmem [shape: f32[1,128], index: 4, kind: input, shape index: {}]
  %s5 = inlined_call_operand.hbm [shape: bf16[128,128], index: 5, kind: input, shape index: {}]
  %s6 = inlined_call_operand.vmem [shape: f32[1,128], index: 6, kind: input, shape index: {}]
  %s7 = inlined_call_operand.hbm [shape: f32[8,128], index: 7, kind: output, shape index: {}]
  %s8 = sld [smem:[#allocation0]]
  $region50: #{mlp_forward_pallas.1} parent=0
    _
  %s10 = ssub.s32 1, %s8
  %s11 = scalar_select 0, %s10, %s8
  $region1: #{mlp_forward_pallas.1} parent=0
    #allocation2 [shape = 'u8[32768]{0}', space=vmem, size = 0x8000, scoped, tag = 'input window, operand 1, single buffered']
    #allocation3 [shape = 's32[1]{0}', space=sflag, size = 0x4, scoped, tag = 'scoped memory for mlp_forward_pallas.1']
    #allocation4 [shape = 's32[1]{0}', space=sflag, size = 0x4, scoped, tag = 'scoped memory for mlp_forward_pallas.1']
    #allocation5 [shape = 'u8[32768]{0}', space=vmem, size = 0x8000, scoped, tag = 'input window, operand 3, single buffered']
    #allocation6 [shape = 's32[1]{0}', space=sflag, size = 0x4, scoped, tag = 'scoped memory for mlp_forward_pallas.1']
    #allocation7 [shape = 'u8[32768]{0}', space=vmem, size = 0x8000, scoped, tag = 'input window, operand 5, single buffered']
    #allocation8 [shape = 'u8[4096]{0}', space=vmem, size = 0x1000, scoped, tag = 'output window, operand 0, single buffered']
    %12 = vsyncpa [#allocation3], 0
    %13 = vsyncpa [#allocation6], 0
    %14 = vsyncpa [#allocation4], 0
    // Predicated region
    $region2: #{mlp_forward_pallas.1} parent=1 // pred_check
      _
    $region3: #{mlp_forward_pallas.1} parent=1 // pred_check_branch
      %16 = sbr.rel (0) target = $region5
    $region4: #{mlp_forward_pallas.1} parent=1 // pred_region
      _
    $region5: #{mlp_forward_pallas.1} parent=1 // pred_fallthru
      _
    // Predicated region
    $region6: #{mlp_forward_pallas.1} parent=1 // pred_check
      _
    $region7: #{mlp_forward_pallas.1} parent=1 // pred_check_branch
      %18 = sbr.rel (0) target = $region9
    $region8: #{mlp_forward_pallas.1} parent=1 // pred_region
      %20 = vsyncadd [#allocation3], 0
      %s21 = sshll.u32 %s1, 4
      %s22 = int_to_ptr.hbm [resolvable:$true] %s21
      %s23 = sshll.u32 [#allocation2], 4
      %s24 = int_to_ptr.vmem [resolvable:$true] %s23
      %29 = dma.hbm_to_vmem [thread:$0]  %s22, 1024, %s24, [#allocation3], 64, 64, 4
    $region9: #{mlp_forward_pallas.1} parent=1 // pred_fallthru
      _
    // Predicated region
    $region10: #{mlp_forward_pallas.1} parent=1 // pred_check
      _
    $region11: #{mlp_forward_pallas.1} parent=1 // pred_check_branch
      %31 = sbr.rel (0) target = $region13
    $region12: #{mlp_forward_pallas.1} parent=1 // pred_region
      _
    $region13: #{mlp_forward_pallas.1} parent=1 // pred_fallthru
      _
    // Predicated region
    $region14: #{mlp_forward_pallas.1} parent=1 // pred_check
      _
    $region15: #{mlp_forward_pallas.1} parent=1 // pred_check_branch
      %33 = sbr.rel (0) target = $region17
    $region16: #{mlp_forward_pallas.1} parent=1 // pred_region
      %35 = vsyncadd [#allocation6], 0
      %s36 = sshll.u32 %s3, 4
      %s37 = int_to_ptr.hbm [resolvable:$true] %s36
      %s38 = sshll.u32 [#allocation5], 4
      %s39 = int_to_ptr.vmem [resolvable:$true] %s38
      %44 = dma.hbm_to_vmem [thread:$0]  %s37, 1024, %s39, [#allocation6], 64, 64, 4
    $region17: #{mlp_forward_pallas.1} parent=1 // pred_fallthru
      _
    // Predicated region
    $region18: #{mlp_forward_pallas.1} parent=1 // pred_check
      _
    $region19: #{mlp_forward_pallas.1} parent=1 // pred_check_branch
      %46 = sbr.rel (0) target = $region21
    $region20: #{mlp_forward_pallas.1} parent=1 // pred_region
      _
    $region21: #{mlp_forward_pallas.1} parent=1 // pred_fallthru
      _
    // Predicated region
    $region22: #{mlp_forward_pallas.1} parent=1 // pred_check
      _
    $region23: #{mlp_forward_pallas.1} parent=1 // pred_check_branch
      %48 = sbr.rel (0) target = $region25
    $region24: #{mlp_forward_pallas.1} parent=1 // pred_region
      %50 = vsyncadd [#allocation6], 0
      %s51 = sshll.u32 %s5, 4
      %s52 = int_to_ptr.hbm [resolvable:$true] %s51
      %s53 = sshll.u32 [#allocation7], 4
      %s54 = int_to_ptr.vmem [resolvable:$true] %s53
      %59 = dma.hbm_to_vmem [thread:$0]  %s52, 1024, %s54, [#allocation6], 64, 64, 4
    $region25: #{mlp_forward_pallas.1} parent=1 // pred_fallthru
      _
    // Predicated region
    $region26: #{mlp_forward_pallas.1} parent=1 // pred_check
      _
    $region27: #{mlp_forward_pallas.1} parent=1 // pred_check_branch
      %61 = sbr.rel (0) target = $region29
    $region28: #{mlp_forward_pallas.1} parent=1 // pred_region
      _
    $region29: #{mlp_forward_pallas.1} parent=1 // pred_fallthru
      _
    // Predicated region
    $region30: #{mlp_forward_pallas.1} parent=1 // pred_check
      _
    $region31: #{mlp_forward_pallas.1} parent=1 // pred_check_branch
      %63 = sbr.rel (0) target = $region33
    $region32: #{mlp_forward_pallas.1} parent=1 // pred_region
      %65 = dma.done [#allocation3], 1024
    $region33: #{mlp_forward_pallas.1} parent=1 // pred_fallthru
      _
    // Predicated region
    $region34: #{mlp_forward_pallas.1} parent=1 // pred_check
      _
    $region35: #{mlp_forward_pallas.1} parent=1 // pred_check_branch
      %67 = sbr.rel (0) target = $region37
    $region36: #{mlp_forward_pallas.1} parent=1 // pred_region
      %69 = dma.done [#allocation6], 1024
    $region37: #{mlp_forward_pallas.1} parent=1 // pred_fallthru
      _
    // Predicated region
    $region38: #{mlp_forward_pallas.1} parent=1 // pred_check
      _
    $region39: #{mlp_forward_pallas.1} parent=1 // pred_check_branch
      %71 = sbr.rel (0) target = $region41
    $region40: #{mlp_forward_pallas.1} parent=1 // pred_region
      %73 = dma.done [#allocation6], 1024
    $region41: #{mlp_forward_pallas.1} parent=1 // pred_fallthru
      _
    %v74 = vld [vmem:[%s0] sm:$0xf]
    %v75 = vld [vmem:[#allocation2] sm:$0xf]
    %v76 = vld [vmem:[#allocation2 + $0x4] sm:$0xf]
    %v77 = vld [vmem:[#allocation2 + $0x8] sm:$0xf]
    %v78 = vld [vmem:[#allocation2 + $0xc] sm:$0xf]
    %v79 = vld [vmem:[#allocation2 + $0x10] sm:$0xf]
    %v80 = vld [vmem:[#allocation2 + $0x14] sm:$0xf]
    %v81 = vld [vmem:[#allocation2 + $0x18] sm:$0xf]
    %v82 = vld [vmem:[#allocation2 + $0x1c] sm:$0xf]
    %v83 = vld [vmem:[#allocation2 + $0x20] sm:$0xf]
    %v84 = vld [vmem:[#allocation2 + $0x24] sm:$0xf]
    %v85 = vld [vmem:[#allocation2 + $0x28] sm:$0xf]
    %v86 = vld [vmem:[#allocation2 + $0x2c] sm:$0xf]
    %v87 = vld [vmem:[#allocation2 + $0x30] sm:$0xf]
    %v88 = vld [vmem:[#allocation2 + $0x34] sm:$0xf]
    %v89 = vld [vmem:[#allocation2 + $0x38] sm:$0xf]
    %v90 = vld [vmem:[#allocation2 + $0x3c] sm:$0xf]
    %v91 = vld [vmem:[%s2] sm:$0x1]
    %v93 = vperm.slane %v91, 0
    %v111 = vunpack.c.l.b16 %v75
    %v112 = vunpack.c.l.b16 %v76
    %v113 = vunpack.c.l.b16 %v77
    %v114 = vunpack.c.l.b16 %v78
    %v115 = vunpack.c.l.b16 %v79
    %v116 = vunpack.c.l.b16 %v80
    %v117 = vunpack.c.l.b16 %v81
    %v118 = vunpack.c.l.b16 %v82
    %v119 = vunpack.c.l.b16 %v83
    %v120 = vunpack.c.l.b16 %v84
    %v121 = vunpack.c.l.b16 %v85
    %v122 = vunpack.c.l.b16 %v86
    %v123 = vunpack.c.l.b16 %v87
    %v124 = vunpack.c.l.b16 %v88
    %v125 = vunpack.c.l.b16 %v89
    %v126 = vunpack.c.l.b16 %v90
    %v127 = vpack.c.b16 %v112, %v111
    %v128 = vpack.c.b16 %v114, %v113
    %v129 = vpack.c.b16 %v116, %v115
    %v130 = vpack.c.b16 %v118, %v117
    %v131 = vpack.c.b16 %v120, %v119
    %v132 = vpack.c.b16 %v122, %v121
    %v133 = vpack.c.b16 %v124, %v123
    %v134 = vpack.c.b16 %v126, %v125
    %143 = vmatpush.bf16.msra.mxu0 %v134
    %144 = vmatpush.bf16.msra.mxu0 %v133
    %145 = vmatpush.bf16.msra.mxu0 %v132
    %146 = vmatpush.bf16.msra.mxu0 %v131
    %147 = vmatpush.bf16.msra.mxu0 %v130
    %148 = vmatpush.bf16.msra.mxu0 %v129
    %149 = vmatpush.bf16.msra.mxu0 %v128
    %150 = vmatpush.bf16.msra.mxu0 %v127
    %151 = vmatmul.bf16.gmra.mxu0 %v74
    %v152 = vpop.f32.mrf.mxu0
    %v153 = vadd.f32 %v93, %v152
    %v154 = vpop.f32.mrf.mxu0
    %155 = vdwg.mxu0
    %v156 = vpack.c.bf16 %v153, %v153
    %v157 = vld [vmem:[#allocation5] sm:$0xf]
    %v158 = vld [vmem:[#allocation5 + $0x4] sm:$0xf]
    %v159 = vld [vmem:[#allocation5 + $0x8] sm:$0xf]
    %v160 = vld [vmem:[#allocation5 + $0xc] sm:$0xf]
    %v161 = vld [vmem:[#allocation5 + $0x10] sm:$0xf]
    %v162 = vld [vmem:[#allocation5 + $0x14] sm:$0xf]
    %v163 = vld [vmem:[#allocation5 + $0x18] sm:$0xf]
    %v164 = vld [vmem:[#allocation5 + $0x1c] sm:$0xf]
    %v165 = vld [vmem:[#allocation5 + $0x20] sm:$0xf]
    %v166 = vld [vmem:[#allocation5 + $0x24] sm:$0xf]
    %v167 = vld [vmem:[#allocation5 + $0x28] sm:$0xf]
    %v168 = vld [vmem:[#allocation5 + $0x2c] sm:$0xf]
    %v169 = vld [vmem:[#allocation5 + $0x30] sm:$0xf]
    %v170 = vld [vmem:[#allocation5 + $0x34] sm:$0xf]
    %v171 = vld [vmem:[#allocation5 + $0x38] sm:$0xf]
    %v172 = vld [vmem:[#allocation5 + $0x3c] sm:$0xf]
    %v173 = vld [vmem:[%s4] sm:$0x1]
    %v175 = vperm.slane %v173, 0
    %v193 = vunpack.c.l.b16 %v157
    %v194 = vunpack.c.l.b16 %v158
    %v195 = vunpack.c.l.b16 %v159
    %v196 = vunpack.c.l.b16 %v160
    %v197 = vunpack.c.l.b16 %v161
    %v198 = vunpack.c.l.b16 %v162
    %v199 = vunpack.c.l.b16 %v163
    %v200 = vunpack.c.l.b16 %v164
    %v201 = vunpack.c.l.b16 %v165
    %v202 = vunpack.c.l.b16 %v166
    %v203 = vunpack.c.l.b16 %v167
    %v204 = vunpack.c.l.b16 %v168
    %v205 = vunpack.c.l.b16 %v169
    %v206 = vunpack.c.l.b16 %v170
    %v207 = vunpack.c.l.b16 %v171
    %v208 = vunpack.c.l.b16 %v172
    %v209 = vpack.c.b16 %v194, %v193
    %v210 = vpack.c.b16 %v196, %v195
    %v211 = vpack.c.b16 %v198, %v197
    %v212 = vpack.c.b16 %v200, %v199
    %v213 = vpack.c.b16 %v202, %v201
    %v214 = vpack.c.b16 %v204, %v203
    %v215 = vpack.c.b16 %v206, %v205
    %v216 = vpack.c.b16 %v208, %v207
    %225 = vmatpush.bf16.msra.mxu0 %v216
    %226 = vmatpush.bf16.msra.mxu0 %v215
    %227 = vmatpush.bf16.msra.mxu0 %v214
    %228 = vmatpush.bf16.msra.mxu0 %v213
    %229 = vmatpush.bf16.msra.mxu0 %v212
    %230 = vmatpush.bf16.msra.mxu0 %v211
    %231 = vmatpush.bf16.msra.mxu0 %v210
    %232 = vmatpush.bf16.msra.mxu0 %v209
    %233 = vmatmul.bf16.gmra.mxu0 %v156
    %v234 = vpop.f32.mrf.mxu0
    %v235 = vadd.f32 %v175, %v234
    %v236 = vpop.f32.mrf.mxu0
    %237 = vdwg.mxu0
    %v238 = vpack.c.bf16 %v235, %v235
    %v239 = vld [vmem:[#allocation7] sm:$0xf]
    %v240 = vld [vmem:[#allocation7 + $0x4] sm:$0xf]
    %v241 = vld [vmem:[#allocation7 + $0x8] sm:$0xf]
    %v242 = vld [vmem:[#allocation7 + $0xc] sm:$0xf]
    %v243 = vld [vmem:[#allocation7 + $0x10] sm:$0xf]
    %v244 = vld [vmem:[#allocation7 + $0x14] sm:$0xf]
    %v245 = vld [vmem:[#allocation7 + $0x18] sm:$0xf]
    %v246 = vld [vmem:[#allocation7 + $0x1c] sm:$0xf]
    %v247 = vld [vmem:[#allocation7 + $0x20] sm:$0xf]
    %v248 = vld [vmem:[#allocation7 + $0x24] sm:$0xf]
    %v249 = vld [vmem:[#allocation7 + $0x28] sm:$0xf]
    %v250 = vld [vmem:[#allocation7 + $0x2c] sm:$0xf]
    %v251 = vld [vmem:[#allocation7 + $0x30] sm:$0xf]
    %v252 = vld [vmem:[#allocation7 + $0x34] sm:$0xf]
    %v253 = vld [vmem:[#allocation7 + $0x38] sm:$0xf]
    %v254 = vld [vmem:[#allocation7 + $0x3c] sm:$0xf]
    %v255 = vld [vmem:[%s6] sm:$0x1]
    %v257 = vperm.slane %v255, 0
    %v275 = vunpack.c.l.b16 %v239
    %v276 = vunpack.c.l.b16 %v240
    %v277 = vunpack.c.l.b16 %v241
    %v278 = vunpack.c.l.b16 %v242
    %v279 = vunpack.c.l.b16 %v243
    %v280 = vunpack.c.l.b16 %v244
    %v281 = vunpack.c.l.b16 %v245
    %v282 = vunpack.c.l.b16 %v246
    %v283 = vunpack.c.l.b16 %v247
    %v284 = vunpack.c.l.b16 %v248
    %v285 = vunpack.c.l.b16 %v249
    %v286 = vunpack.c.l.b16 %v250
    %v287 = vunpack.c.l.b16 %v251
    %v288 = vunpack.c.l.b16 %v252
    %v289 = vunpack.c.l.b16 %v253
    %v290 = vunpack.c.l.b16 %v254
    %v291 = vpack.c.b16 %v276, %v275
    %v292 = vpack.c.b16 %v278, %v277
    %v293 = vpack.c.b16 %v280, %v279
    %v294 = vpack.c.b16 %v282, %v281
    %v295 = vpack.c.b16 %v284, %v283
    %v296 = vpack.c.b16 %v286, %v285
    %v297 = vpack.c.b16 %v288, %v287
    %v298 = vpack.c.b16 %v290, %v289
    %307 = vmatpush.bf16.msra.mxu0 %v298
    %308 = vmatpush.bf16.msra.mxu0 %v297
    %309 = vmatpush.bf16.msra.mxu0 %v296
    %310 = vmatpush.bf16.msra.mxu0 %v295
    %311 = vmatpush.bf16.msra.mxu0 %v294
    %312 = vmatpush.bf16.msra.mxu0 %v293
    %313 = vmatpush.bf16.msra.mxu0 %v292
    %314 = vmatpush.bf16.msra.mxu0 %v291
    %315 = vmatmul.bf16.gmra.mxu0 %v238
    %v316 = vpop.f32.mrf.mxu0
    %v317 = vadd.f32 %v257, %v316
    %v318 = vpop.f32.mrf.mxu0
    %319 = vdwg.mxu0
    %v320 = vsub.f32 0.0, %v317
    %v321 = vmul.f32 %v320, 1.442695
    %v322 = vpow.pop %v321
    %v323 = vadd.f32 %v322, 1.0
    %v324 = vrcp.pop %v323
    %325 = vst [vmem:[#allocation8] sm:$0xff] %v324
    // Predicated region
    $region42: #{mlp_forward_pallas.1} parent=1 // pred_check
      _
    $region43: #{mlp_forward_pallas.1} parent=1 // pred_check_branch
      %327 = sbr.rel (0) target = $region45
    $region44: #{mlp_forward_pallas.1} parent=1 // pred_region
      %329 = vsyncadd [#allocation4], 0
      %s331 = sshll.u32 [#allocation8], 4
      %s332 = int_to_ptr.vmem [resolvable:$true] %s331
      %s333 = sshll.u32 %s7, 4
      %s334 = int_to_ptr.hbm [resolvable:$true] %s333
      %336 = dma.vmem_to_hbm [thread:$0]  %s332, 128, %s334, [#allocation4]
    $region45: #{mlp_forward_pallas.1} parent=1 // pred_fallthru
      _
    // Predicated region
    $region46: #{mlp_forward_pallas.1} parent=1 // pred_check
      _
    $region47: #{mlp_forward_pallas.1} parent=1 // pred_check_branch
      %338 = sbr.rel (0) target = $region49
    $region48: #{mlp_forward_pallas.1} parent=1 // pred_region
      %340 = dma.done [#allocation4], 128
    $region49: #{mlp_forward_pallas.1} parent=1 // pred_fallthru
      _
    %341 = vsyncpa [#allocation3], 1
    %342 = vsyncpa [#allocation6], 1
    %343 = vsyncpa [#allocation4], 1

</llo_original>
